<compile_context>
chip_gen: v7x
topology: tpu7x:2x2x1
jax: 0.10.0
libtpu: 0.0.40
codegen_flags: <defaults>
</compile_context>

<pallas_src>
import functools
import re

import jax
import jax.numpy as jnp
from jax.experimental import pallas as pl
from jax.experimental.pallas import tpu as pltpu

NEG_INF = -1e30    # Python float -> no captured jax-array constant in kernels
NEG_SLOPE = 0.2    # PyG GATConv default negative_slope


# ------------------------------ small helpers -------------------------------

def _round_up(x, m):
    return ((x + m - 1) // m) * m


def _tpu_generation():
    """Best-effort TPU generation from device_kind ('TPU v5 lite' -> 5)."""
    try:
        kind = jax.devices()[0].device_kind.lower()
    except Exception:
        return 6
    m = re.search(r"(\d+)", kind)
    return int(m.group(1)) if m else 6


def _vmem_cap_bytes(gen):
    # v7x has 64 MiB physical VMEM per TensorCore -> leave headroom; v5e/v6e
    # have 128 MiB, so allow larger tiles there.
    return (48 << 20) if gen >= 7 else (100 << 20)


def _clamp_vmem(estimate_bytes, cap_bytes):
    return int(min(max(estimate_bytes + (4 << 20), 16 << 20), cap_bytes))


def _choose_tiles(n, *, attn_target=256, proj_target=1024, num_cores=1):
    """Pick (n_pad, attention tile, projection tile); 16-granular (bf16 tiles)."""
    n16 = max(16, _round_up(n, 16))
    attn_tile = min(attn_target, n16)
    if num_cores >= 2:
        # Ensure >= num_cores grid steps so both TensorCores get rows (v7x).
        half = _round_up((n16 + num_cores - 1) // num_cores, 16)
        attn_tile = min(attn_tile, max(16, half))
    n_pad = _round_up(n16, attn_tile)
    k = n_pad // attn_tile
    cand = [m for m in range(1, k + 1)
            if k % m == 0 and m * attn_tile <= proj_target
            and (k // m >= num_cores or m == 1)]
    proj_tile = (max(cand) if cand else 1) * attn_tile
    return n_pad, attn_tile, proj_tile


def _pad_rows(a, n_pad):
    n = a.shape[0]
    if n_pad == n:
        return a
    return jnp.pad(a, ((0, n_pad - n), (0, 0)))


def _block_diag_att(a):
    """(heads, C) attention vector -> block-diagonal (heads*C, heads) matrix so
    alpha = h_all @ A computes all per-head reductions as one matmul."""
    heads, c = a.shape
    m = jnp.zeros((heads * c, heads), jnp.float32)
    for h in range(heads):
        m = m.at[h * c:(h + 1) * c, h].set(a[h])
    return m


# ----------------------------- Pallas kernels --------------------------------

def _project_kernel(x_ref, w_ref, att_ref, h_ref, alpha_ref):
    """h = x @ W (bf16 MXU), alpha = h_bf16 @ [block-diag(a_src)|block-diag(a_dst)]."""
    h = jnp.dot(x_ref[...].astype(jnp.bfloat16), w_ref[...],
                preferred_element_type=jnp.float32)            # (T, D) f32
    h_bf = h.astype(jnp.bfloat16)
    h_ref[...] = h_bf
    alpha_ref[...] = jnp.dot(h_bf, att_ref[...],
                             preferred_element_type=jnp.float32)  # (T, 2*heads)


def _attn_agg_kernel(hsrc_ref, asrcT_ref, adst_ref, mask_ref, bias_ref, out_ref,
                     *, heads, out_ch, concat, apply_elu, use_bf16):
    """Attention softmax + aggregation for one destination-row tile.

    hsrc:  (N_src, heads*C) bf16   projected features of all source nodes
    asrcT: (heads, N_src)   f32    per-head alpha_src, already transposed
    adst:  (T, heads)       f32    alpha_dst for this dst tile
    mask:  (T, N_src)       bf16   additive mask (0 edge / -1e30 non-edge)
    bias:  (1, D_out)       f32
    out:   (T, D_out)       out_ref.dtype
    """
    ct = jnp.bfloat16 if use_bf16 else jnp.float32
    h_src = hsrc_ref[...]
    mask = mask_ref[...].astype(ct)
    a_d = adst_ref[...].astype(ct)

    outs = []
    acc = None
    for hd in range(heads):  # heads is small & static -> unrolled
        # e[i, j] = LeakyReLU(alpha_dst[i] + alpha_src[j]) + mask[i, j]
        e = a_d[:, hd:hd + 1] + asrcT_ref[hd:hd + 1, :].astype(ct)   # (T, N_src)
        e = jnp.where(e > 0, e, NEG_SLOPE * e)                       # LeakyReLU
        e = e + mask
        m = jnp.max(e, axis=1, keepdims=True)
        p = jnp.exp(e - m)                                           # EUP (ct)
        s = jnp.sum(p.astype(jnp.float32), axis=1, keepdims=True)    # f32 sum
        attn = (p * pl.reciprocal(s, approx=True).astype(ct)).astype(jnp.bfloat16)
        # TODO(synk): attention dropout (p=0.2) omitted -- eval-mode semantics.
        hh = h_src[:, hd * out_ch:(hd + 1) * out_ch]                 # (N_src, C)
        o = jnp.dot(attn, hh, preferred_element_type=jnp.float32)    # (T, C)
        if concat:
            outs.append(o)
        else:
            acc = o if acc is None else acc + o

    # Single lane-dense store of the full (T, D_out) tile.
    out = jnp.concatenate(outs, axis=-1) if concat else acc * (1.0 / heads)
    out = out + bias_ref[...]
    if apply_elu:
        out = jnp.where(out > 0, out, jnp.exp(out) - 1.0)            # ELU(a=1)
    out_ref[...] = out.astype(out_ref.dtype)


def _fused_gat_layer_kernel(x_ref, w_ref, attsrcT_ref, attdst_ref, mask_ref,
                            bias_ref, out_ref, *, heads, out_ch, concat,
                            apply_elu, use_bf16):
    """Tiny-graph path: projection + attention + aggregation in one call.
    Everything (x, W, mask, h, alpha) stays VMEM-resident."""
    ct = jnp.bfloat16 if use_bf16 else jnp.float32
    h_bf = jnp.dot(x_ref[...].astype(jnp.bfloat16), w_ref[...],
                   preferred_element_type=jnp.float32).astype(jnp.bfloat16)
    a_dst = jnp.dot(h_bf, attdst_ref[...],
                    preferred_element_type=jnp.float32)              # (N, heads)
    mask = mask_ref[...].astype(ct)

    outs = []
    acc = None
    for hd in range(heads):
        # alpha_src row for this head, directly in (1, N) layout via an
        # 'nt' matmul (avoids any in-kernel sublane->lane transpose).
        a_src_row = jax.lax.dot_general(
            attsrcT_ref[hd:hd + 1, :].astype(jnp.bfloat16), h_bf,
            dimension_numbers=(((1,), (1,)), ((), ())),
            preferred_element_type=jnp.float32)                      # (1, N)
        e = (a_dst[:, hd:hd + 1] + a_src_row).astype(ct)
        e = jnp.where(e > 0, e, NEG_SLOPE * e)
        e = e + mask
        m = jnp.max(e, axis=1, keepdims=True)
        p = jnp.exp(e - m)
        s = jnp.sum(p.astype(jnp.float32), axis=1, keepdims=True)
        attn = (p * pl.reciprocal(s, approx=True).astype(ct)).astype(jnp.bfloat16)
        o = jnp.dot(attn, h_bf[:, hd * out_ch:(hd + 1) * out_ch],
                    preferred_element_type=jnp.float32)
        if concat:
            outs.append(o)
        else:
            acc = o if acc is None else acc + o

    out = jnp.concatenate(outs, axis=-1) if concat else acc * (1.0 / heads)
    out = out + bias_ref[...]
    if apply_elu:
        out = jnp.where(out > 0, out, jnp.exp(out) - 1.0)
    out_ref[...] = out.astype(out_ref.dtype)


def _pool_fc_kernel(pool_ref, x_ref, w_ref, b_ref, out_ref):
    """global_mean_pool (normalized assignment matmul) + final Linear."""
    pooled = jnp.dot(pool_ref[...], x_ref[...],
                     preferred_element_type=jnp.float32)             # (G, hidden)
    out_ref[...] = jnp.dot(pooled, w_ref[...],
                           preferred_element_type=jnp.float32) + b_ref[...]


# ------------------------------ pallas wrappers ------------------------------

def gat_projection(x_pad, w_bf, att_bf, *, tile, vmem_cap):
    n_pad, f_in = x_pad.shape
    d = w_bf.shape[1]
    two_h = att_bf.shape[1]
    grid = (n_pad // tile,)
    xb = jnp.dtype(x_pad.dtype).itemsize

    flops = 2 * n_pad * f_in * d + 2 * n_pad * d * two_h
    bytes_accessed = (n_pad * f_in * xb + f_in * d * 2 + d * two_h * 2
                      + n_pad * d * 2 + n_pad * two_h * 4)
    vmem_est = (2 * (tile * f_in * xb + tile * d * 2 + tile * two_h * 4)
                + 2 * (f_in * d * 2 + d * two_h * 2))

    return pl.pallas_call(
        _project_kernel,
        out_shape=(jax.ShapeDtypeStruct((n_pad, d), jnp.bfloat16),
                   jax.ShapeDtypeStruct((n_pad, two_h), jnp.float32)),
        grid=grid,
        in_specs=[
            pl.BlockSpec((tile, f_in), lambda i: (i, 0)),   # x rows (tiled)
            pl.BlockSpec((f_in, d), lambda i: (0, 0)),      # W (resident, bf16)
            pl.BlockSpec((d, two_h), lambda i: (0, 0)),     # [a_src|a_dst] bdiag
        ],
        out_specs=(pl.BlockSpec((tile, d), lambda i: (i, 0)),
                   pl.BlockSpec((tile, two_h), lambda i: (i, 0))),
        compiler_params=pltpu.CompilerParams(
            dimension_semantics=("parallel",),
            vmem_limit_bytes=_clamp_vmem(vmem_est, vmem_cap)),
        cost_estimate=pl.CostEstimate(flops=int(flops), transcendentals=0,
                                      bytes_accessed=int(bytes_accessed)),
    )(x_pad, w_bf, att_bf)


def gat_attention(h_bf16, alpha_src_T, alpha_dst, mask_bias, bias, *,
                  heads, out_ch, concat, apply_elu, use_bf16, out_dtype,
                  tile, vmem_cap):
    n_pad = h_bf16.shape[0]
    d_out = heads * out_ch if concat else out_ch
    grid = (n_pad // tile,)
    ob = jnp.dtype(out_dtype).itemsize
    kernel = functools.partial(_attn_agg_kernel, heads=heads, out_ch=out_ch,
                               concat=concat, apply_elu=apply_elu,
                               use_bf16=use_bf16)

    flops = 2 * n_pad * n_pad * heads * out_ch + 8 * n_pad * n_pad * heads
    transcendentals = n_pad * n_pad * heads
    bytes_accessed = (n_pad * n_pad * 2 + n_pad * heads * out_ch * 2
                      + n_pad * d_out * ob + 2 * n_pad * heads * 4)
    work = 2 if use_bf16 else 4
    vmem_est = (2 * n_pad * heads * out_ch * 2   # resident h_all (bf16)
                + 2 * heads * n_pad * 4          # resident alpha_src_T
                + 2 * tile * heads * 4           # alpha_dst
                + 2 * tile * n_pad * 2           # mask tile (bf16)
                + 2 * tile * d_out * ob          # output tile
                + 4 * tile * n_pad * work)       # softmax working block

    return pl.pallas_call(
        kernel,
        out_shape=jax.ShapeDtypeStruct((n_pad, d_out), out_dtype),
        grid=grid,
        in_specs=[
            pl.BlockSpec((n_pad, heads * out_ch), lambda i: (0, 0)),  # h_all
            pl.BlockSpec((heads, n_pad), lambda i: (0, 0)),           # alpha_src^T
            pl.BlockSpec((tile, heads), lambda i: (i, 0)),            # alpha_dst
            pl.BlockSpec((tile, n_pad), lambda i: (i, 0)),            # mask (bf16)
            pl.BlockSpec((1, d_out), lambda i: (0, 0)),               # bias
        ],
        out_specs=pl.BlockSpec((tile, d_out), lambda i: (i, 0)),
        compiler_params=pltpu.CompilerParams(
            dimension_semantics=("parallel",),
            vmem_limit_bytes=_clamp_vmem(vmem_est, vmem_cap)),
        cost_estimate=pl.CostEstimate(flops=int(flops),
                                      transcendentals=int(transcendentals),
                                      bytes_accessed=int(bytes_accessed)),
    )(h_bf16, alpha_src_T, alpha_dst, mask_bias, bias)


def gat_layer_fused(x_pad, w_bf, att_srcT, att_dst_bf, mask_bias, bias, *,
                    heads, out_ch, concat, apply_elu, use_bf16, out_dtype,
                    vmem_cap):
    n_pad = x_pad.shape[0]
    d = w_bf.shape[1]
    d_out = heads * out_ch if concat else out_ch
    kernel = functools.partial(_fused_gat_layer_kernel, heads=heads,
                               out_ch=out_ch, concat=concat,
                               apply_elu=apply_elu, use_bf16=use_bf16)
    flops = (2 * n_pad * x_pad.shape[1] * d + 4 * n_pad * d * heads
             + heads * (2 * n_pad * n_pad * (out_ch + 1) + 8 * n_pad * n_pad))
    bytes_accessed = (x_pad.size * jnp.dtype(x_pad.dtype).itemsize
                      + w_bf.size * 2 + n_pad * n_pad * 2
                      + n_pad * d_out * jnp.dtype(out_dtype).itemsize)
    vmem_specs = [pl.BlockSpec(memory_space=pltpu.MemorySpace.VMEM)] * 6
    return pl.pallas_call(
        kernel,
        out_shape=jax.ShapeDtypeStruct((n_pad, d_out), out_dtype),
        in_specs=vmem_specs,
        out_specs=pl.BlockSpec(memory_space=pltpu.MemorySpace.VMEM),
        compiler_params=pltpu.CompilerParams(
            vmem_limit_bytes=_clamp_vmem(4 * n_pad * (d + n_pad), vmem_cap)),
        cost_estimate=pl.CostEstimate(flops=int(flops),
                                      transcendentals=int(heads * n_pad * n_pad),
                                      bytes_accessed=int(bytes_accessed)),
    )(x_pad, w_bf, att_srcT, att_dst_bf, mask_bias, bias)


def gat_layer_tiled(x_pad, w_bf, att_bf, mask_bias, bias, *, heads, out_ch,
                    concat, apply_elu, use_bf16, out_dtype, proj_tile,
                    attn_tile, vmem_cap):
    h_bf, alpha = gat_projection(x_pad, w_bf, att_bf, tile=proj_tile,
                                 vmem_cap=vmem_cap)
    # Wrapper-side layout plumbing: tiny (N, heads) -> (heads, N) transpose so
    # the hot kernel only does cheap sublane-row slices per head.
    alpha_src_T = alpha[:, :heads].T
    alpha_dst = alpha[:, heads:]
    return gat_attention(h_bf, alpha_src_T, alpha_dst, mask_bias, bias,
                         heads=heads, out_ch=out_ch, concat=concat,
                         apply_elu=apply_elu, use_bf16=use_bf16,
                         out_dtype=out_dtype, tile=attn_tile, vmem_cap=vmem_cap)


def gat_layer(x_pad, w, a_src, a_dst, bias, mask_bias, *, heads, out_ch,
              concat, apply_elu, use_bf16, out_dtype, fused, attn_tile,
              proj_tile, vmem_cap):
    w_bf = w.astype(jnp.bfloat16)
    bd_src = _block_diag_att(a_src)
    bd_dst = _block_diag_att(a_dst)
    if fused:
        return gat_layer_fused(x_pad, w_bf, bd_src.T,
                               bd_dst.astype(jnp.bfloat16), mask_bias, bias,
                               heads=heads, out_ch=out_ch, concat=concat,
                               apply_elu=apply_elu, use_bf16=use_bf16,
                               out_dtype=out_dtype, vmem_cap=vmem_cap)
    att_bf = jnp.concatenate([bd_src, bd_dst], axis=1).astype(jnp.bfloat16)
    return gat_layer_tiled(x_pad, w_bf, att_bf, mask_bias, bias, heads=heads,
                           out_ch=out_ch, concat=concat, apply_elu=apply_elu,
                           use_bf16=use_bf16, out_dtype=out_dtype,
                           proj_tile=proj_tile, attn_tile=attn_tile,
                           vmem_cap=vmem_cap)


def pool_fc(pool_mat, x, w_fc, b_fc):
    g = pool_mat.shape[0]
    out_dim = w_fc.shape[1]
    vmem_specs = [pl.BlockSpec(memory_space=pltpu.MemorySpace.VMEM)
                  for _ in range(4)]
    return pl.pallas_call(
        _pool_fc_kernel,
        out_shape=jax.ShapeDtypeStruct((g, out_dim), jnp.float32),
        in_specs=vmem_specs,
        out_specs=pl.BlockSpec(memory_space=pltpu.MemorySpace.VMEM),
    )(pool_mat, x, w_fc, b_fc)


# ------------------------------ model (glue) ---------------------------------

def init_params(key, input_dim, hidden_dim, output_dim, heads):
    ks = jax.random.split(key, 10)
    s = 0.1
    return {
        "emb": s * jax.random.normal(ks[0], (1, input_dim), jnp.float32),
        # gat1: in -> hidden, heads, concat=True
        "w1": s * jax.random.normal(ks[1], (input_dim, heads * hidden_dim), jnp.float32),
        "a1_src": s * jax.random.normal(ks[2], (heads, hidden_dim), jnp.float32),
        "a1_dst": s * jax.random.normal(ks[3], (heads, hidden_dim), jnp.float32),
        "b1": s * jax.random.normal(ks[4], (1, heads * hidden_dim), jnp.float32),
        # gat2: hidden*heads -> hidden, 1 head, concat=False
        "w2": s * jax.random.normal(ks[5], (heads * hidden_dim, hidden_dim), jnp.float32),
        "a2_src": s * jax.random.normal(ks[6], (1, hidden_dim), jnp.float32),
        "a2_dst": s * jax.random.normal(ks[7], (1, hidden_dim), jnp.float32),
        "b2": s * jax.random.normal(ks[8], (1, hidden_dim), jnp.float32),
        # fc: hidden -> output
        "w_fc": s * jax.random.normal(ks[9], (hidden_dim, output_dim), jnp.float32),
        "b_fc": jnp.zeros((1, output_dim), jnp.float32),
    }


def build_mask_bias(edge_index, num_nodes, n_pad):
    """Additive attention mask (bf16): 0 where an edge src->dst exists (plus
    self-loops, matching GATConv add_self_loops=True), NEG_INF elsewhere.
    Padded rows/cols have no edges, so padded sources get ~zero attention."""
    # TODO(synk): duplicate edges collapse to one entry (PyG attends per edge).
    src, dst = edge_index[0], edge_index[1]
    adj = jnp.zeros((n_pad, n_pad), jnp.float32)
    adj = adj.at[dst, src].set(1.0)
    idx = jnp.arange(num_nodes)
    adj = adj.at[idx, idx].set(1.0)
    return jnp.where(adj > 0, 0.0, NEG_INF).astype(jnp.bfloat16)


def build_pool_matrix(batch, num_graphs, n_pad):
    batch_pad = jnp.full((n_pad,), -1, jnp.int32).at[:batch.shape[0]].set(batch)
    onehot = (batch_pad[None, :] == jnp.arange(num_graphs)[:, None]).astype(jnp.float32)
    counts = jnp.sum(onehot, axis=1, keepdims=True)
    return onehot / jnp.maximum(counts, 1.0)  # (G, N_pad) mean-pool matrix


def gat_model_forward(params, x, edge_index, batch, num_graphs, *,
                      hidden_dim, heads, attn_tile_target=256,
                      proj_tile_target=1024, fuse_threshold=512):
    gen = _tpu_generation()
    use_bf16 = gen >= 6                 # bf16 VPU/EUP on v6e/v7x; f32 on v5e
    num_cores = 2 if gen >= 7 else 1    # v7x: 2 TensorCores per chip
    vmem_cap = _vmem_cap_bytes(gen)

    # Embedding path (only used when node features are integer indices).
    # TODO(synk): nn.Embedding(1, input_dim) only has one valid row, as in the
    # original module.
    if jnp.issubdtype(x.dtype, jnp.integer):
        x = jnp.take(params["emb"], x.reshape(-1), axis=0)
    x = x.astype(jnp.float32)
    n = x.shape[0]

    n8 = max(8, _round_up(n, 8))
    fused = n8 <= fuse_threshold        # tiny-graph regime -> single-call layers
    if fused:
        n_pad, attn_tile, proj_tile = n8, n8, n8
    else:
        n_pad, attn_tile, proj_tile = _choose_tiles(
            n, attn_target=attn_tile_target, proj_target=proj_tile_target,
            num_cores=num_cores)

    x_pad = _pad_rows(x, n_pad)
    mask_bias = build_mask_bias(edge_index, n, n_pad)      # bf16 additive mask
    pool_mat = build_pool_matrix(batch, num_graphs, n_pad)

    common = dict(use_bf16=use_bf16, fused=fused, attn_tile=attn_tile,
                  proj_tile=proj_tile, vmem_cap=vmem_cap)

    # gat1 + ELU (fused); layer-1 activations stored as bf16 (layer-2 input)
    x1 = gat_layer(x_pad, params["w1"], params["a1_src"], params["a1_dst"],
                   params["b1"], mask_bias, heads=heads, out_ch=hidden_dim,
                   concat=True, apply_elu=True, out_dtype=jnp.bfloat16,
                   **common)
    # gat2 (1 head, concat=False) + ELU (fused)
    x2 = gat_layer(x1, params["w2"], params["a2_src"], params["a2_dst"],
                   params["b2"], mask_bias, heads=1, out_ch=hidden_dim,
                   concat=False, apply_elu=True, out_dtype=jnp.float32,
                   **common)
    # global_mean_pool + fc (padded nodes have zero pool weight)
    return pool_fc(pool_mat, x2, params["w_fc"], params["b_fc"])


# ---------------------------------- main --------------------------------------

if __name__ == "__main__":
    input_dim, hidden_dim, output_dim, heads = 16, 32, 3, 4
    num_nodes, num_graphs = 8, 2

    key = jax.random.PRNGKey(0)
    k_param, k_x = jax.random.split(key)
    params = init_params(k_param, input_dim, hidden_dim, output_dim, heads)

    # Two small graphs of 4 nodes each.
    x = jax.random.normal(k_x, (num_nodes, input_dim), jnp.float32)
    edge_index = jnp.array(
        [[0, 1, 1, 2, 3, 4, 5, 5, 6, 7],      # src
         [1, 0, 2, 3, 0, 5, 4, 6, 7, 4]],     # dst
        dtype=jnp.int32)
    batch = jnp.array([0, 0, 0, 0, 1, 1, 1, 1], dtype=jnp.int32)

    out = gat_model_forward(params, x, edge_index, batch, num_graphs,
                            hidden_dim=hidden_dim, heads=heads)
    out = jax.block_until_ready(out)
    assert out.shape == (num_graphs, output_dim)
    assert bool(jnp.all(jnp.isfinite(out)))
    print("KERNEL_OK")
</pallas_src>

<mosaic_0001>
module attributes {stable_mosaic.version = 11 : i64} {
  func.func @_fused_gat_layer_kernel(%arg0: memref<8x16xf32, #tpu.memory_space<vmem>>, %arg1: memref<16x128xbf16, #tpu.memory_space<vmem>>, %arg2: memref<4x128xf32, #tpu.memory_space<vmem>>, %arg3: memref<128x4xbf16, #tpu.memory_space<vmem>>, %arg4: memref<8x8xbf16, #tpu.memory_space<vmem>>, %arg5: memref<1x128xf32, #tpu.memory_space<vmem>>, %arg6: memref<8x128xbf16, #tpu.memory_space<vmem>>) attributes {dimension_semantics = [], scalar_prefetch = 0 : i64, scratch_operands = 0 : i64, tpu.core_type = #tpu.core_type<tc>} {
    %c0 = arith.constant 0 : index
    %c0_0 = arith.constant 0 : index
    %0 = vector.load %arg0[%c0, %c0_0] : memref<8x16xf32, #tpu.memory_space<vmem>>, vector<8x16xf32>
    %1 = arith.truncf %0 : vector<8x16xf32> to vector<8x16xbf16>
    %c0_1 = arith.constant 0 : index
    %c0_2 = arith.constant 0 : index
    %2 = vector.load %arg1[%c0_1, %c0_2] : memref<16x128xbf16, #tpu.memory_space<vmem>>, vector<16x128xbf16>
    %cst = arith.constant dense<0.000000e+00> : vector<8x128xf32>
    %3 = tpu.matmul %1, %2, %cst {dimension_numbers = #tpu.dot_dimension_numbers<[1], [0], [0], [1], [0, 0, 1, 1], [], []>} : vector<8x16xbf16>, vector<16x128xbf16>, vector<8x128xf32> -> vector<8x128xf32>
    %4 = arith.truncf %3 : vector<8x128xf32> to vector<8x128xbf16>
    %c0_3 = arith.constant 0 : index
    %c0_4 = arith.constant 0 : index
    %5 = vector.load %arg3[%c0_3, %c0_4] : memref<128x4xbf16, #tpu.memory_space<vmem>>, vector<128x4xbf16>
    %cst_5 = arith.constant dense<0.000000e+00> : vector<8x4xf32>
    %6 = tpu.matmul %4, %5, %cst_5 {dimension_numbers = #tpu.dot_dimension_numbers<[1], [0], [0], [1], [0, 0, 1, 1], [], []>} : vector<8x128xbf16>, vector<128x4xbf16>, vector<8x4xf32> -> vector<8x4xf32>
    %c0_6 = arith.constant 0 : index
    %c0_7 = arith.constant 0 : index
    %7 = vector.load %arg4[%c0_6, %c0_7] : memref<8x8xbf16, #tpu.memory_space<vmem>>, vector<8x8xbf16>
    %c0_8 = arith.constant 0 : index
    %c0_9 = arith.constant 0 : index
    %8 = vector.load %arg2[%c0_8, %c0_9] : memref<4x128xf32, #tpu.memory_space<vmem>>, vector<1x128xf32>
    %9 = arith.truncf %8 : vector<1x128xf32> to vector<1x128xbf16>
    %cst_10 = arith.constant dense<0.000000e+00> : vector<1x8xf32>
    %10 = tpu.matmul %9, %4, %cst_10 {dimension_numbers = #tpu.dot_dimension_numbers<[1], [1], [0], [0], [0, 0, 1, 0], [], []>} : vector<1x128xbf16>, vector<8x128xbf16>, vector<1x8xf32> -> vector<1x8xf32>
    %11 = vector.extract_strided_slice %6 {offsets = [0, 0], sizes = [8, 1], strides = [1, 1]} : vector<8x4xf32> to vector<8x1xf32>
    %12 = vector.broadcast %11 : vector<8x1xf32> to vector<8x8xf32>
    %13 = vector.broadcast %10 : vector<1x8xf32> to vector<8x8xf32>
    %14 = arith.addf %12, %13 : vector<8x8xf32>
    %15 = arith.truncf %14 : vector<8x8xf32> to vector<8x8xbf16>
    %cst_11 = arith.constant 0.000000e+00 : bf16
    %16 = vector.broadcast %cst_11 : bf16 to vector<8x8xbf16>
    %17 = arith.cmpf ogt, %15, %16 : vector<8x8xbf16>
    %cst_12 = arith.constant 2.001950e-01 : bf16
    %18 = vector.broadcast %cst_12 : bf16 to vector<8x8xbf16>
    %19 = arith.mulf %18, %15 : vector<8x8xbf16>
    %20 = arith.select %17, %15, %19 : vector<8x8xi1>, vector<8x8xbf16>
    %21 = arith.addf %20, %7 : vector<8x8xbf16>
    %cst_13 = arith.constant dense<0xFF80> : vector<8xbf16>
    %22 = vector.multi_reduction <maximumf>, %21, %cst_13 [1] : vector<8x8xbf16> to vector<8xbf16>
    %23 = vector.shape_cast %22 : vector<8xbf16> to vector<8x1xbf16>
    %24 = vector.broadcast %23 : vector<8x1xbf16> to vector<8x8xbf16>
    %25 = arith.subf %21, %24 : vector<8x8xbf16>
    %26 = math.exp %25 : vector<8x8xbf16>
    %27 = arith.extf %26 : vector<8x8xbf16> to vector<8x8xf32>
    %cst_14 = arith.constant dense<0.000000e+00> : vector<8xf32>
    %28 = vector.multi_reduction <add>, %27, %cst_14 [1] : vector<8x8xf32> to vector<8xf32>
    %29 = vector.shape_cast %28 : vector<8xf32> to vector<8x1xf32>
    %30 = tpu.reciprocal %29 {approx = true} : vector<8x1xf32> -> vector<8x1xf32>
    %31 = arith.truncf %30 : vector<8x1xf32> to vector<8x1xbf16>
    %32 = vector.broadcast %31 : vector<8x1xbf16> to vector<8x8xbf16>
    %33 = arith.mulf %26, %32 : vector<8x8xbf16>
    %34 = vector.extract_strided_slice %4 {offsets = [0, 0], sizes = [8, 32], strides = [1, 1]} : vector<8x128xbf16> to vector<8x32xbf16>
    %cst_15 = arith.constant dense<0.000000e+00> : vector<8x32xf32>
    %35 = tpu.matmul %33, %34, %cst_15 {dimension_numbers = #tpu.dot_dimension_numbers<[1], [0], [0], [1], [0, 0, 1, 1], [], []>} : vector<8x8xbf16>, vector<8x32xbf16>, vector<8x32xf32> -> vector<8x32xf32>
    %c1 = arith.constant 1 : index
    %c0_16 = arith.constant 0 : index
    %36 = vector.load %arg2[%c1, %c0_16] : memref<4x128xf32, #tpu.memory_space<vmem>>, vector<1x128xf32>
    %37 = arith.truncf %36 : vector<1x128xf32> to vector<1x128xbf16>
    %cst_17 = arith.constant dense<0.000000e+00> : vector<1x8xf32>
    %38 = tpu.matmul %37, %4, %cst_17 {dimension_numbers = #tpu.dot_dimension_numbers<[1], [1], [0], [0], [0, 0, 1, 0], [], []>} : vector<1x128xbf16>, vector<8x128xbf16>, vector<1x8xf32> -> vector<1x8xf32>
    %39 = vector.extract_strided_slice %6 {offsets = [0, 1], sizes = [8, 1], strides = [1, 1]} : vector<8x4xf32> to vector<8x1xf32>
    %40 = vector.broadcast %39 : vector<8x1xf32> to vector<8x8xf32>
    %41 = vector.broadcast %38 : vector<1x8xf32> to vector<8x8xf32>
    %42 = arith.addf %40, %41 : vector<8x8xf32>
    %43 = arith.truncf %42 : vector<8x8xf32> to vector<8x8xbf16>
    %cst_18 = arith.constant 0.000000e+00 : bf16
    %44 = vector.broadcast %cst_18 : bf16 to vector<8x8xbf16>
    %45 = arith.cmpf ogt, %43, %44 : vector<8x8xbf16>
    %cst_19 = arith.constant 2.001950e-01 : bf16
    %46 = vector.broadcast %cst_19 : bf16 to vector<8x8xbf16>
    %47 = arith.mulf %46, %43 : vector<8x8xbf16>
    %48 = arith.select %45, %43, %47 : vector<8x8xi1>, vector<8x8xbf16>
    %49 = arith.addf %48, %7 : vector<8x8xbf16>
    %cst_20 = arith.constant dense<0xFF80> : vector<8xbf16>
    %50 = vector.multi_reduction <maximumf>, %49, %cst_20 [1] : vector<8x8xbf16> to vector<8xbf16>
    %51 = vector.shape_cast %50 : vector<8xbf16> to vector<8x1xbf16>
    %52 = vector.broadcast %51 : vector<8x1xbf16> to vector<8x8xbf16>
    %53 = arith.subf %49, %52 : vector<8x8xbf16>
    %54 = math.exp %53 : vector<8x8xbf16>
    %55 = arith.extf %54 : vector<8x8xbf16> to vector<8x8xf32>
    %cst_21 = arith.constant dense<0.000000e+00> : vector<8xf32>
    %56 = vector.multi_reduction <add>, %55, %cst_21 [1] : vector<8x8xf32> to vector<8xf32>
    %57 = vector.shape_cast %56 : vector<8xf32> to vector<8x1xf32>
    %58 = tpu.reciprocal %57 {approx = true} : vector<8x1xf32> -> vector<8x1xf32>
    %59 = arith.truncf %58 : vector<8x1xf32> to vector<8x1xbf16>
    %60 = vector.broadcast %59 : vector<8x1xbf16> to vector<8x8xbf16>
    %61 = arith.mulf %54, %60 : vector<8x8xbf16>
    %62 = vector.extract_strided_slice %4 {offsets = [0, 32], sizes = [8, 32], strides = [1, 1]} : vector<8x128xbf16> to vector<8x32xbf16>
    %cst_22 = arith.constant dense<0.000000e+00> : vector<8x32xf32>
    %63 = tpu.matmul %61, %62, %cst_22 {dimension_numbers = #tpu.dot_dimension_numbers<[1], [0], [0], [1], [0, 0, 1, 1], [], []>} : vector<8x8xbf16>, vector<8x32xbf16>, vector<8x32xf32> -> vector<8x32xf32>
    %c2 = arith.constant 2 : index
    %c0_23 = arith.constant 0 : index
    %64 = vector.load %arg2[%c2, %c0_23] : memref<4x128xf32, #tpu.memory_space<vmem>>, vector<1x128xf32>
    %65 = arith.truncf %64 : vector<1x128xf32> to vector<1x128xbf16>
    %cst_24 = arith.constant dense<0.000000e+00> : vector<1x8xf32>
    %66 = tpu.matmul %65, %4, %cst_24 {dimension_numbers = #tpu.dot_dimension_numbers<[1], [1], [0], [0], [0, 0, 1, 0], [], []>} : vector<1x128xbf16>, vector<8x128xbf16>, vector<1x8xf32> -> vector<1x8xf32>
    %67 = vector.extract_strided_slice %6 {offsets = [0, 2], sizes = [8, 1], strides = [1, 1]} : vector<8x4xf32> to vector<8x1xf32>
    %68 = vector.broadcast %67 : vector<8x1xf32> to vector<8x8xf32>
    %69 = vector.broadcast %66 : vector<1x8xf32> to vector<8x8xf32>
    %70 = arith.addf %68, %69 : vector<8x8xf32>
    %71 = arith.truncf %70 : vector<8x8xf32> to vector<8x8xbf16>
    %cst_25 = arith.constant 0.000000e+00 : bf16
    %72 = vector.broadcast %cst_25 : bf16 to vector<8x8xbf16>
    %73 = arith.cmpf ogt, %71, %72 : vector<8x8xbf16>
    %cst_26 = arith.constant 2.001950e-01 : bf16
    %74 = vector.broadcast %cst_26 : bf16 to vector<8x8xbf16>
    %75 = arith.mulf %74, %71 : vector<8x8xbf16>
    %76 = arith.select %73, %71, %75 : vector<8x8xi1>, vector<8x8xbf16>
    %77 = arith.addf %76, %7 : vector<8x8xbf16>
    %cst_27 = arith.constant dense<0xFF80> : vector<8xbf16>
    %78 = vector.multi_reduction <maximumf>, %77, %cst_27 [1] : vector<8x8xbf16> to vector<8xbf16>
    %79 = vector.shape_cast %78 : vector<8xbf16> to vector<8x1xbf16>
    %80 = vector.broadcast %79 : vector<8x1xbf16> to vector<8x8xbf16>
    %81 = arith.subf %77, %80 : vector<8x8xbf16>
    %82 = math.exp %81 : vector<8x8xbf16>
    %83 = arith.extf %82 : vector<8x8xbf16> to vector<8x8xf32>
    %cst_28 = arith.constant dense<0.000000e+00> : vector<8xf32>
    %84 = vector.multi_reduction <add>, %83, %cst_28 [1] : vector<8x8xf32> to vector<8xf32>
    %85 = vector.shape_cast %84 : vector<8xf32> to vector<8x1xf32>
    %86 = tpu.reciprocal %85 {approx = true} : vector<8x1xf32> -> vector<8x1xf32>
    %87 = arith.truncf %86 : vector<8x1xf32> to vector<8x1xbf16>
    %88 = vector.broadcast %87 : vector<8x1xbf16> to vector<8x8xbf16>
    %89 = arith.mulf %82, %88 : vector<8x8xbf16>
    %90 = vector.extract_strided_slice %4 {offsets = [0, 64], sizes = [8, 32], strides = [1, 1]} : vector<8x128xbf16> to vector<8x32xbf16>
    %cst_29 = arith.constant dense<0.000000e+00> : vector<8x32xf32>
    %91 = tpu.matmul %89, %90, %cst_29 {dimension_numbers = #tpu.dot_dimension_numbers<[1], [0], [0], [1], [0, 0, 1, 1], [], []>} : vector<8x8xbf16>, vector<8x32xbf16>, vector<8x32xf32> -> vector<8x32xf32>
    %c3 = arith.constant 3 : index
    %c0_30 = arith.constant 0 : index
    %92 = vector.load %arg2[%c3, %c0_30] : memref<4x128xf32, #tpu.memory_space<vmem>>, vector<1x128xf32>
    %93 = arith.truncf %92 : vector<1x128xf32> to vector<1x128xbf16>
    %cst_31 = arith.constant dense<0.000000e+00> : vector<1x8xf32>
    %94 = tpu.matmul %93, %4, %cst_31 {dimension_numbers = #tpu.dot_dimension_numbers<[1], [1], [0], [0], [0, 0, 1, 0], [], []>} : vector<1x128xbf16>, vector<8x128xbf16>, vector<1x8xf32> -> vector<1x8xf32>
    %95 = vector.extract_strided_slice %6 {offsets = [0, 3], sizes = [8, 1], strides = [1, 1]} : vector<8x4xf32> to vector<8x1xf32>
    %96 = vector.broadcast %95 : vector<8x1xf32> to vector<8x8xf32>
    %97 = vector.broadcast %94 : vector<1x8xf32> to vector<8x8xf32>
    %98 = arith.addf %96, %97 : vector<8x8xf32>
    %99 = arith.truncf %98 : vector<8x8xf32> to vector<8x8xbf16>
    %cst_32 = arith.constant 0.000000e+00 : bf16
    %100 = vector.broadcast %cst_32 : bf16 to vector<8x8xbf16>
    %101 = arith.cmpf ogt, %99, %100 : vector<8x8xbf16>
    %cst_33 = arith.constant 2.001950e-01 : bf16
    %102 = vector.broadcast %cst_33 : bf16 to vector<8x8xbf16>
    %103 = arith.mulf %102, %99 : vector<8x8xbf16>
    %104 = arith.select %101, %99, %103 : vector<8x8xi1>, vector<8x8xbf16>
    %105 = arith.addf %104, %7 : vector<8x8xbf16>
    %cst_34 = arith.constant dense<0xFF80> : vector<8xbf16>
    %106 = vector.multi_reduction <maximumf>, %105, %cst_34 [1] : vector<8x8xbf16> to vector<8xbf16>
    %107 = vector.shape_cast %106 : vector<8xbf16> to vector<8x1xbf16>
    %108 = vector.broadcast %107 : vector<8x1xbf16> to vector<8x8xbf16>
    %109 = arith.subf %105, %108 : vector<8x8xbf16>
    %110 = math.exp %109 : vector<8x8xbf16>
    %111 = arith.extf %110 : vector<8x8xbf16> to vector<8x8xf32>
    %cst_35 = arith.constant dense<0.000000e+00> : vector<8xf32>
    %112 = vector.multi_reduction <add>, %111, %cst_35 [1] : vector<8x8xf32> to vector<8xf32>
    %113 = vector.shape_cast %112 : vector<8xf32> to vector<8x1xf32>
    %114 = tpu.reciprocal %113 {approx = true} : vector<8x1xf32> -> vector<8x1xf32>
    %115 = arith.truncf %114 : vector<8x1xf32> to vector<8x1xbf16>
    %116 = vector.broadcast %115 : vector<8x1xbf16> to vector<8x8xbf16>
    %117 = arith.mulf %110, %116 : vector<8x8xbf16>
    %118 = vector.extract_strided_slice %4 {offsets = [0, 96], sizes = [8, 32], strides = [1, 1]} : vector<8x128xbf16> to vector<8x32xbf16>
    %cst_36 = arith.constant dense<0.000000e+00> : vector<8x32xf32>
    %119 = tpu.matmul %117, %118, %cst_36 {dimension_numbers = #tpu.dot_dimension_numbers<[1], [0], [0], [1], [0, 0, 1, 1], [], []>} : vector<8x8xbf16>, vector<8x32xbf16>, vector<8x32xf32> -> vector<8x32xf32>
    %120 = tpu.concatenate %35, %63, %91, %119 in 1 : vector<8x32xf32>, vector<8x32xf32>, vector<8x32xf32>, vector<8x32xf32> -> vector<8x128xf32>
    %c0_37 = arith.constant 0 : index
    %c0_38 = arith.constant 0 : index
    %121 = vector.load %arg5[%c0_37, %c0_38] : memref<1x128xf32, #tpu.memory_space<vmem>>, vector<1x128xf32>
    %122 = vector.broadcast %121 : vector<1x128xf32> to vector<8x128xf32>
    %123 = arith.addf %120, %122 : vector<8x128xf32>
    %cst_39 = arith.constant 0.000000e+00 : f32
    %124 = vector.broadcast %cst_39 : f32 to vector<8x128xf32>
    %125 = arith.cmpf ogt, %123, %124 : vector<8x128xf32>
    %126 = math.exp %123 : vector<8x128xf32>
    %cst_40 = arith.constant 1.000000e+00 : f32
    %127 = vector.broadcast %cst_40 : f32 to vector<8x128xf32>
    %128 = arith.subf %126, %127 : vector<8x128xf32>
    %129 = arith.select %125, %123, %128 : vector<8x128xi1>, vector<8x128xf32>
    %130 = arith.truncf %129 : vector<8x128xf32> to vector<8x128xbf16>
    %c0_41 = arith.constant 0 : index
    %c0_42 = arith.constant 0 : index
    %131 = vector.load %arg6[%c0_41, %c0_42] : memref<8x128xbf16, #tpu.memory_space<vmem>>, vector<8x128xbf16>
    tpu.vector_store %arg6[%c0_41, %c0_42], %130 {strides = array<i32>} : memref<8x128xbf16, #tpu.memory_space<vmem>>, vector<8x128xbf16>,
    return
  }
}

</mosaic_0001>

<llo_original>
// kernel: tpu_custom_call.1
$region0: #{tpu_custom_call.1}
  #allocation0 [shape = 'u32[]', space=smem, size = 0x4, offset = 0x4, fixed_abs, tag = 'smem constant byte address 0x4 - core index']
  #allocation1 [shape = 'u32[144,128]{1,0:T(1,128)}', space=vmem, size = 0x12000, scoped, tag = 'internal scratch']
  %s0 = inlined_call_operand.vmem [shape: f32[8,16], index: 0, kind: input, shape index: {}]
  %s1 = inlined_call_operand.vmem [shape: bf16[16,128], index: 1, kind: input, shape index: {}]
  %s2 = inlined_call_operand.vmem [shape: f32[4,128], index: 2, kind: input, shape index: {}]
  %s3 = inlined_call_operand.vmem [shape: bf16[128,4], index: 3, kind: input, shape index: {}]
  %s4 = inlined_call_operand.vmem [shape: bf16[8,8], index: 4, kind: input, shape index: {}]
  %s5 = inlined_call_operand.vmem [shape: f32[1,128], index: 5, kind: input, shape index: {}]
  %s6 = inlined_call_operand.hbm [shape: bf16[8,128], index: 6, kind: output, shape index: {}]
  %s7 = sld [smem:[#allocation0]]
  $region34: #{tpu_custom_call.1} parent=0
    _
  %s9 = ssub.s32 1, %s7
  %s10 = scalar_select 0, %s9, %s7
  $region1: #{tpu_custom_call.1} parent=0
    #allocation2 [shape = 'u8[2048]{0}', space=vmem, size = 0x800, scoped, tag = 'output window, operand 0, single buffered']
    #allocation3 [shape = 's32[1]{0}', space=sflag, size = 0x4, scoped, tag = 'scoped memory for tpu_custom_call.1']
    %11 = vsyncpa [#allocation3], 0
    // Predicated region
    $region2: #{tpu_custom_call.1} parent=1 // pred_check
      _
    $region3: #{tpu_custom_call.1} parent=1 // pred_check_branch
      %13 = sbr.rel (0) target = $region5
    $region4: #{tpu_custom_call.1} parent=1 // pred_region
      _
    $region5: #{tpu_custom_call.1} parent=1 // pred_fallthru
      _
    // Predicated region
    $region6: #{tpu_custom_call.1} parent=1 // pred_check
      _
    $region7: #{tpu_custom_call.1} parent=1 // pred_check_branch
      %15 = sbr.rel (0) target = $region9
    $region8: #{tpu_custom_call.1} parent=1 // pred_region
      _
    $region9: #{tpu_custom_call.1} parent=1 // pred_fallthru
      _
    // Predicated region
    $region10: #{tpu_custom_call.1} parent=1 // pred_check
      _
    $region11: #{tpu_custom_call.1} parent=1 // pred_check_branch
      %17 = sbr.rel (0) target = $region13
    $region12: #{tpu_custom_call.1} parent=1 // pred_region
      _
    $region13: #{tpu_custom_call.1} parent=1 // pred_fallthru
      _
    // Predicated region
    $region14: #{tpu_custom_call.1} parent=1 // pred_check
      _
    $region15: #{tpu_custom_call.1} parent=1 // pred_check_branch
      %19 = sbr.rel (0) target = $region17
    $region16: #{tpu_custom_call.1} parent=1 // pred_region
      _
    $region17: #{tpu_custom_call.1} parent=1 // pred_fallthru
      _
    // Predicated region
    $region18: #{tpu_custom_call.1} parent=1 // pred_check
      _
    $region19: #{tpu_custom_call.1} parent=1 // pred_check_branch
      %21 = sbr.rel (0) target = $region21
    $region20: #{tpu_custom_call.1} parent=1 // pred_region
      _
    $region21: #{tpu_custom_call.1} parent=1 // pred_fallthru
      _
    // Predicated region
    $region22: #{tpu_custom_call.1} parent=1 // pred_check
      _
    $region23: #{tpu_custom_call.1} parent=1 // pred_check_branch
      %23 = sbr.rel (0) target = $region25
    $region24: #{tpu_custom_call.1} parent=1 // pred_region
      _
    $region25: #{tpu_custom_call.1} parent=1 // pred_fallthru
      _
    %v27 = vld [vmem:[%s0] sm:$0xff]
    %v28 = vpack.c.bf16 %v27, %v27
    %v29 = vld [vmem:[%s1] sm:$0xf]
    %v30 = vld [vmem:[%s1 + $0x4] sm:$0xf]
    %v33 = vunpack.c.l.b16 %v29
    %v34 = vunpack.c.l.b16 %v30
    %v35 = vpack.c.b16 %v34, %v33
    %vm37 = vcmask 130048
    %v39 = vsel %vm37, %v28, 0
    %41 = vmatprep.subr.bf16.mxu0 0
    %42 = vmatpush1.bf16.msra.mxu0 %v35
    %43 = vmatprep.subr.bf16.mxu0 0
    %44 = vmatpush1.bf16.msra.mxu0 0
    %45 = vmatprep.subr.bf16.mxu0 0
    %46 = vmatpush1.bf16.msra.mxu0 0
    %47 = vmatprep.subr.bf16.mxu0 0
    %48 = vmatpush1.bf16.msra.mxu0 0
    %49 = vmatprep.subr.bf16.mxu0 0
    %50 = vmatpush1.bf16.msra.mxu0 0
    %51 = vmatprep.subr.bf16.mxu0 0
    %52 = vmatpush1.bf16.msra.mxu0 0
    %53 = vmatprep.subr.bf16.mxu0 0
    %54 = vmatpush1.bf16.msra.mxu0 0
    %55 = vmatprep.subr.bf16.mxu0 0
    %56 = vmatpush1.bf16.msra.mxu0 0
    %57 = vmatprep.subr.bf16.mxu0 0
    %58 = vmatpush1.bf16.msra.mxu0 0
    %59 = vmatprep.subr.bf16.mxu0 0
    %60 = vmatpush1.bf16.msra.mxu0 0
    %61 = vmatprep.subr.bf16.mxu0 0
    %62 = vmatpush1.bf16.msra.mxu0 0
    %63 = vmatprep.subr.bf16.mxu0 0
    %64 = vmatpush1.bf16.msra.mxu0 0
    %65 = vmatprep.subr.bf16.mxu0 0
    %66 = vmatpush1.bf16.msra.mxu0 0
    %67 = vmatprep.subr.bf16.mxu0 0
    %68 = vmatpush1.bf16.msra.mxu0 0
    %69 = vmatprep.subr.bf16.mxu0 0
    %70 = vmatpush1.bf16.msra.mxu0 0
    %71 = vmatprep.subr.bf16.mxu0 0
    %72 = vmatpush1.bf16.msra.mxu0 0
    %73 = vmatprep.mubr.bf16.mxu0 0
    %74 = vmatmul.mubr.bf16.gmra.mrb[0].mxu0 %v39
    %v75 = vpop.f32.mrb[0].mxu0
    %v76 = vadd.f32 0.0, %v75
    %v77 = vpop.f32.mrb[0].mxu0
    %v78 = vpop.f32.mrb[0].mxu0
    %v79 = vpop.f32.mrb[0].mxu0
    %80 = vdwg.mxu0
    %v81 = vpack.c.bf16 %v76, %v76
    %v82 = vld [vmem:[%s3] sm:$0xf]
    %v83 = vld [vmem:[%s3 + $0x4] sm:$0xf]
    %v84 = vld [vmem:[%s3 + $0x8] sm:$0xf]
    %v85 = vld [vmem:[%s3 + $0xc] sm:$0xf]
    %v86 = vld [vmem:[%s3 + $0x10] sm:$0xf]
    %v87 = vld [vmem:[%s3 + $0x14] sm:$0xf]
    %v88 = vld [vmem:[%s3 + $0x18] sm:$0xf]
    %v89 = vld [vmem:[%s3 + $0x1c] sm:$0xf]
    %v90 = vld [vmem:[%s3 + $0x20] sm:$0xf]
    %v91 = vld [vmem:[%s3 + $0x24] sm:$0xf]
    %v92 = vld [vmem:[%s3 + $0x28] sm:$0xf]
    %v93 = vld [vmem:[%s3 + $0x2c] sm:$0xf]
    %v94 = vld [vmem:[%s3 + $0x30] sm:$0xf]
    %v95 = vld [vmem:[%s3 + $0x34] sm:$0xf]
    %v96 = vld [vmem:[%s3 + $0x38] sm:$0xf]
    %v97 = vld [vmem:[%s3 + $0x3c] sm:$0xf]
    %v114 = vunpack.c.l.b16 %v82
    %v115 = vunpack.c.l.b16 %v83
    %v116 = vunpack.c.l.b16 %v84
    %v117 = vunpack.c.l.b16 %v85
    %v118 = vunpack.c.l.b16 %v86
    %v119 = vunpack.c.l.b16 %v87
    %v120 = vunpack.c.l.b16 %v88
    %v121 = vunpack.c.l.b16 %v89
    %v122 = vunpack.c.l.b16 %v90
    %v123 = vunpack.c.l.b16 %v91
    %v124 = vunpack.c.l.b16 %v92
    %v125 = vunpack.c.l.b16 %v93
    %v126 = vunpack.c.l.b16 %v94
    %v127 = vunpack.c.l.b16 %v95
    %v128 = vunpack.c.l.b16 %v96
    %v129 = vunpack.c.l.b16 %v97
    %v130 = vpack.c.b16 %v115, %v114
    %v131 = vpack.c.b16 %v117, %v116
    %v132 = vpack.c.b16 %v119, %v118
    %v133 = vpack.c.b16 %v121, %v120
    %v134 = vpack.c.b16 %v123, %v122
    %v135 = vpack.c.b16 %v125, %v124
    %v136 = vpack.c.b16 %v127, %v126
    %v137 = vpack.c.b16 %v129, %v128
    %146 = vmatprep.subr.bf16.mxu0 0
    %147 = vmatpush1.bf16.msra.mxu0 %v130
    %148 = vmatprep.subr.bf16.mxu0 0
    %149 = vmatpush1.bf16.msra.mxu0 %v131
    %150 = vmatprep.subr.bf16.mxu0 0
    %151 = vmatpush1.bf16.msra.mxu0 %v132
    %152 = vmatprep.subr.bf16.mxu0 0
    %153 = vmatpush1.bf16.msra.mxu0 %v133
    %154 = vmatprep.subr.bf16.mxu0 0
    %155 = vmatpush1.bf16.msra.mxu0 %v134
    %156 = vmatprep.subr.bf16.mxu0 0
    %157 = vmatpush1.bf16.msra.mxu0 %v135
    %158 = vmatprep.subr.bf16.mxu0 0
    %159 = vmatpush1.bf16.msra.mxu0 %v136
    %160 = vmatprep.subr.bf16.mxu0 0
    %161 = vmatpush1.bf16.msra.mxu0 %v137
    %162 = vmatprep.subr.bf16.mxu0 0
    %163 = vmatpush1.bf16.msra.mxu0 0
    %164 = vmatprep.subr.bf16.mxu0 0
    %165 = vmatpush1.bf16.msra.mxu0 0
    %166 = vmatprep.subr.bf16.mxu0 0
    %167 = vmatpush1.bf16.msra.mxu0 0
    %168 = vmatprep.subr.bf16.mxu0 0
    %169 = vmatpush1.bf16.msra.mxu0 0
    %170 = vmatprep.subr.bf16.mxu0 0
    %171 = vmatpush1.bf16.msra.mxu0 0
    %172 = vmatprep.subr.bf16.mxu0 0
    %173 = vmatpush1.bf16.msra.mxu0 0
    %174 = vmatprep.subr.bf16.mxu0 0
    %175 = vmatpush1.bf16.msra.mxu0 0
    %176 = vmatprep.subr.bf16.mxu0 0
    %177 = vmatpush1.bf16.msra.mxu0 0
    %178 = vmatprep.mubr.bf16.mxu0 0
    %179 = vmatmul.mubr.bf16.gmra.mrb[0].mxu0 %v81
    %v180 = vpop.f32.mrb[0].mxu0
    %v181 = vadd.f32 0.0, %v180
    %v182 = vpop.f32.mrb[0].mxu0
    %v183 = vpop.f32.mrb[0].mxu0
    %v184 = vpop.f32.mrb[0].mxu0
    %185 = vdwg.mxu0
    %v186 = vld [vmem:[%s4] sm:$0xf]
    %v187 = vld [vmem:[%s2] sm:$0x1]
    %v188 = vpack.c.bf16 %v187, %v187
    %189 = vmatprep.subr.bf16.mxu0 0
    %190 = vmatpush1.bf16.xpose.msra.mxu0 %v81
    %191 = vmatprep.subr.bf16.mxu0 0
    %192 = vmatpush1.bf16.xpose.msra.mxu0 0
    %193 = vmatprep.subr.bf16.mxu0 0
    %194 = vmatpush1.bf16.xpose.msra.mxu0 0
    %195 = vmatprep.subr.bf16.mxu0 0
    %196 = vmatpush1.bf16.xpose.msra.mxu0 0
    %197 = vmatprep.subr.bf16.mxu0 0
    %198 = vmatpush1.bf16.xpose.msra.mxu0 0
    %199 = vmatprep.subr.bf16.mxu0 0
    %200 = vmatpush1.bf16.xpose.msra.mxu0 0
    %201 = vmatprep.subr.bf16.mxu0 0
    %202 = vmatpush1.bf16.xpose.msra.mxu0 0
    %203 = vmatprep.subr.bf16.mxu0 0
    %204 = vmatpush1.bf16.xpose.msra.mxu0 0
    %205 = vmatprep.subr.bf16.mxu0 0
    %206 = vmatpush1.bf16.xpose.msra.mxu0 0
    %207 = vmatprep.subr.bf16.mxu0 0
    %208 = vmatpush1.bf16.xpose.msra.mxu0 0
    %209 = vmatprep.subr.bf16.mxu0 0
    %210 = vmatpush1.bf16.xpose.msra.mxu0 0
    %211 = vmatprep.subr.bf16.mxu0 0
    %212 = vmatpush1.bf16.xpose.msra.mxu0 0
    %213 = vmatprep.subr.bf16.mxu0 0
    %214 = vmatpush1.bf16.xpose.msra.mxu0 0
    %215 = vmatprep.subr.bf16.mxu0 0
    %216 = vmatpush1.bf16.xpose.msra.mxu0 0
    %217 = vmatprep.subr.bf16.mxu0 0
    %218 = vmatpush1.bf16.xpose.msra.mxu0 0
    %219 = vmatprep.subr.bf16.mxu0 0
    %220 = vmatpush1.bf16.xpose.msra.mxu0 0
    %221 = vmatprep.mubr.bf16.mxu0 0
    %222 = vmatmul.mubr.bf16.gmra.mrb[0].mxu0 %v188
    %v223 = vpop.f32.mrb[0].mxu0
    %v224 = vadd.f32 0.0, %v223
    %v225 = vpop.f32.mrb[0].mxu0
    %v226 = vpop.f32.mrb[0].mxu0
    %v227 = vpop.f32.mrb[0].mxu0
    %228 = vdwg.mxu0
    %230 = vset.pattern.permute.xlu0 0
    %231 = vperm.xlu0 %230, %v181
    %v232 = vpop.permute.xlu0 %231
    %v234 = vlaneseq
    %v235 = vshrl.u32 %v234, 7
    %v236 = vsub.s32 0, %v235
    %v237 = vrot.slane %v224, %v236
    %v238 = vadd.f32 %v232, %v237
    %v239 = vpack.c.bf16 %v238, %v238
    %vm240 = vcmp.gt.bf16.partialorder %v239, 0
    %v241 = vmul.bf16 %v239, 1045249613
    %v242 = vsel %vm240, %v239, %v241
    %v243 = vadd.bf16 %v242, %v186
    %vm244 = vcmask 60416
    %v247 = vsel %vm244, %v243, 4286644096
    %249 = vmax.xlane.bf16.xlu0 %v247
    %v250 = vpop.xlane.xlu0 %249
    %v251 = vsub.bf16 %v243, %v250
    %v253 = vmul.bf16 %v251, 1069105081
    %v254 = vpow.bf16.pop %v253
    %v255 = vunpack.c.l.bf16 %v254
    %vm256 = vcmask 64512
    %v257 = vsel %vm256, %v255, 0.0
    %258 = vadd.xlane.f32.xlu0 %v257
    %v259 = vpop.xlane.xlu0 %258
    %v260 = vrcp.pop %v259
    %v261 = vpack.c.bf16 %v260, %v260
    %v262 = vmul.bf16 %v254, %v261
    %v264 = vsel %vm256, %v262, 0
    %vm266 = vcmask 1043456
    %v268 = vsel %vm266, %v81, 0
    %270 = vmatprep.subr.bf16.mxu0 0
    %271 = vmatpush1.bf16.msra.mxu0 %v268
    %272 = vmatprep.subr.bf16.mxu0 0
    %273 = vmatpush1.bf16.msra.mxu0 0
    %274 = vmatprep.subr.bf16.mxu0 0
    %275 = vmatpush1.bf16.msra.mxu0 0
    %276 = vmatprep.subr.bf16.mxu0 0
    %277 = vmatpush1.bf16.msra.mxu0 0
    %278 = vmatprep.subr.bf16.mxu0 0
    %279 = vmatpush1.bf16.msra.mxu0 0
    %280 = vmatprep.subr.bf16.mxu0 0
    %281 = vmatpush1.bf16.msra.mxu0 0
    %282 = vmatprep.subr.bf16.mxu0 0
    %283 = vmatpush1.bf16.msra.mxu0 0
    %284 = vmatprep.subr.bf16.mxu0 0
    %285 = vmatpush1.bf16.msra.mxu0 0
    %286 = vmatprep.subr.bf16.mxu0 0
    %287 = vmatpush1.bf16.msra.mxu0 0
    %288 = vmatprep.subr.bf16.mxu0 0
    %289 = vmatpush1.bf16.msra.mxu0 0
    %290 = vmatprep.subr.bf16.mxu0 0
    %291 = vmatpush1.bf16.msra.mxu0 0
    %292 = vmatprep.subr.bf16.mxu0 0
    %293 = vmatpush1.bf16.msra.mxu0 0
    %294 = vmatprep.subr.bf16.mxu0 0
    %295 = vmatpush1.bf16.msra.mxu0 0
    %296 = vmatprep.subr.bf16.mxu0 0
    %297 = vmatpush1.bf16.msra.mxu0 0
    %298 = vmatprep.subr.bf16.mxu0 0
    %299 = vmatpush1.bf16.msra.mxu0 0
    %300 = vmatprep.subr.bf16.mxu0 0
    %301 = vmatpush1.bf16.msra.mxu0 0
    %302 = vmatprep.mubr.bf16.mxu0 0
    %303 = vmatmul.mubr.bf16.gmra.mrb[0].mxu0 %v264
    %v304 = vpop.f32.mrb[0].mxu0
    %v305 = vadd.f32 0.0, %v304
    %v306 = vpop.f32.mrb[0].mxu0
    %v307 = vpop.f32.mrb[0].mxu0
    %v308 = vpop.f32.mrb[0].mxu0
    %309 = vdwg.mxu0
    %v310 = vld [vmem:[%s2 + $0x1] sm:$0x1]
    %v311 = vpack.c.bf16 %v310, %v310
    %312 = vmatprep.subr.bf16.mxu0 0
    %313 = vmatpush1.bf16.xpose.msra.mxu0 %v81
    %314 = vmatprep.subr.bf16.mxu0 0
    %315 = vmatpush1.bf16.xpose.msra.mxu0 0
    %316 = vmatprep.subr.bf16.mxu0 0
    %317 = vmatpush1.bf16.xpose.msra.mxu0 0
    %318 = vmatprep.subr.bf16.mxu0 0
    %319 = vmatpush1.bf16.xpose.msra.mxu0 0
    %320 = vmatprep.subr.bf16.mxu0 0
    %321 = vmatpush1.bf16.xpose.msra.mxu0 0
    %322 = vmatprep.subr.bf16.mxu0 0
    %323 = vmatpush1.bf16.xpose.msra.mxu0 0
    %324 = vmatprep.subr.bf16.mxu0 0
    %325 = vmatpush1.bf16.xpose.msra.mxu0 0
    %326 = vmatprep.subr.bf16.mxu0 0
    %327 = vmatpush1.bf16.xpose.msra.mxu0 0
    %328 = vmatprep.subr.bf16.mxu0 0
    %329 = vmatpush1.bf16.xpose.msra.mxu0 0
    %330 = vmatprep.subr.bf16.mxu0 0
    %331 = vmatpush1.bf16.xpose.msra.mxu0 0
    %332 = vmatprep.subr.bf16.mxu0 0
    %333 = vmatpush1.bf16.xpose.msra.mxu0 0
    %334 = vmatprep.subr.bf16.mxu0 0
    %335 = vmatpush1.bf16.xpose.msra.mxu0 0
    %336 = vmatprep.subr.bf16.mxu0 0
    %337 = vmatpush1.bf16.xpose.msra.mxu0 0
    %338 = vmatprep.subr.bf16.mxu0 0
    %339 = vmatpush1.bf16.xpose.msra.mxu0 0
    %340 = vmatprep.subr.bf16.mxu0 0
    %341 = vmatpush1.bf16.xpose.msra.mxu0 0
    %342 = vmatprep.subr.bf16.mxu0 0
    %343 = vmatpush1.bf16.xpose.msra.mxu0 0
    %344 = vmatprep.mubr.bf16.mxu0 0
    %345 = vmatmul.mubr.bf16.gmra.mrb[0].mxu0 %v311
    %v346 = vpop.f32.mrb[0].mxu0
    %v347 = vadd.f32 0.0, %v346
    %v348 = vpop.f32.mrb[0].mxu0
    %v349 = vpop.f32.mrb[0].mxu0
    %v350 = vpop.f32.mrb[0].mxu0
    %351 = vdwg.mxu0
    %352 = vset.pattern.permute.xlu0 1
    %353 = vperm.xlu0 %352, %v181
    %v354 = vpop.permute.xlu0 %353
    %v356 = vlaneseq
    %v357 = vshrl.u32 %v356, 7
    %v358 = vsub.s32 0, %v357
    %v359 = vrot.slane %v347, %v358
    %v360 = vadd.f32 %v354, %v359
    %v361 = vpack.c.bf16 %v360, %v360
    %vm362 = vcmp.gt.bf16.partialorder %v361, 0
    %v363 = vmul.bf16 %v361, 1045249613
    %v364 = vsel %vm362, %v361, %v363
    %v365 = vadd.bf16 %v364, %v186
    %v367 = vsel %vm244, %v365, 4286644096
    %369 = vmax.xlane.bf16.xlu0 %v367
    %v370 = vpop.xlane.xlu0 %369
    %v371 = vsub.bf16 %v365, %v370
    %v373 = vmul.bf16 %v371, 1069105081
    %v374 = vpow.bf16.pop %v373
    %v375 = vunpack.c.l.bf16 %v374
    %v376 = vsel %vm256, %v375, 0.0
    %377 = vadd.xlane.f32.xlu0 %v376
    %v378 = vpop.xlane.xlu0 %377
    %v379 = vrcp.pop %v378
    %v380 = vpack.c.bf16 %v379, %v379
    %v381 = vmul.bf16 %v374, %v380
    %383 = vrot.lane.b32.xlu0 %v81, 96
    %v384 = vpop.permute.xlu0 %383
    %v386 = vsel %vm256, %v381, 0
    %v389 = vsel %vm266, %v384, 0
    %391 = vmatprep.subr.bf16.mxu0 0
    %392 = vmatpush1.bf16.msra.mxu0 %v389
    %393 = vmatprep.subr.bf16.mxu0 0
    %394 = vmatpush1.bf16.msra.mxu0 0
    %395 = vmatprep.subr.bf16.mxu0 0
    %396 = vmatpush1.bf16.msra.mxu0 0
    %397 = vmatprep.subr.bf16.mxu0 0
    %398 = vmatpush1.bf16.msra.mxu0 0
    %399 = vmatprep.subr.bf16.mxu0 0
    %400 = vmatpush1.bf16.msra.mxu0 0
    %401 = vmatprep.subr.bf16.mxu0 0
    %402 = vmatpush1.bf16.msra.mxu0 0
    %403 = vmatprep.subr.bf16.mxu0 0
    %404 = vmatpush1.bf16.msra.mxu0 0
    %405 = vmatprep.subr.bf16.mxu0 0
    %406 = vmatpush1.bf16.msra.mxu0 0
    %407 = vmatprep.subr.bf16.mxu0 0
    %408 = vmatpush1.bf16.msra.mxu0 0
    %409 = vmatprep.subr.bf16.mxu0 0
    %410 = vmatpush1.bf16.msra.mxu0 0
    %411 = vmatprep.subr.bf16.mxu0 0
    %412 = vmatpush1.bf16.msra.mxu0 0
    %413 = vmatprep.subr.bf16.mxu0 0
    %414 = vmatpush1.bf16.msra.mxu0 0
    %415 = vmatprep.subr.bf16.mxu0 0
    %416 = vmatpush1.bf16.msra.mxu0 0
    %417 = vmatprep.subr.bf16.mxu0 0
    %418 = vmatpush1.bf16.msra.mxu0 0
    %419 = vmatprep.subr.bf16.mxu0 0
    %420 = vmatpush1.bf16.msra.mxu0 0
    %421 = vmatprep.subr.bf16.mxu0 0
    %422 = vmatpush1.bf16.msra.mxu0 0
    %423 = vmatprep.mubr.bf16.mxu0 0
    %424 = vmatmul.mubr.bf16.gmra.mrb[0].mxu0 %v386
    %v425 = vpop.f32.mrb[0].mxu0
    %v426 = vadd.f32 0.0, %v425
    %v427 = vpop.f32.mrb[0].mxu0
    %v428 = vpop.f32.mrb[0].mxu0
    %v429 = vpop.f32.mrb[0].mxu0
    %430 = vdwg.mxu0
    %v431 = vld [vmem:[%s2 + $0x2] sm:$0x1]
    %v432 = vpack.c.bf16 %v431, %v431
    %433 = vmatprep.subr.bf16.mxu0 0
    %434 = vmatpush1.bf16.xpose.msra.mxu0 %v81
    %435 = vmatprep.subr.bf16.mxu0 0
    %436 = vmatpush1.bf16.xpose.msra.mxu0 0
    %437 = vmatprep.subr.bf16.mxu0 0
    %438 = vmatpush1.bf16.xpose.msra.mxu0 0
    %439 = vmatprep.subr.bf16.mxu0 0
    %440 = vmatpush1.bf16.xpose.msra.mxu0 0
    %441 = vmatprep.subr.bf16.mxu0 0
    %442 = vmatpush1.bf16.xpose.msra.mxu0 0
    %443 = vmatprep.subr.bf16.mxu0 0
    %444 = vmatpush1.bf16.xpose.msra.mxu0 0
    %445 = vmatprep.subr.bf16.mxu0 0
    %446 = vmatpush1.bf16.xpose.msra.mxu0 0
    %447 = vmatprep.subr.bf16.mxu0 0
    %448 = vmatpush1.bf16.xpose.msra.mxu0 0
    %449 = vmatprep.subr.bf16.mxu0 0
    %450 = vmatpush1.bf16.xpose.msra.mxu0 0
    %451 = vmatprep.subr.bf16.mxu0 0
    %452 = vmatpush1.bf16.xpose.msra.mxu0 0
    %453 = vmatprep.subr.bf16.mxu0 0
    %454 = vmatpush1.bf16.xpose.msra.mxu0 0
    %455 = vmatprep.subr.bf16.mxu0 0
    %456 = vmatpush1.bf16.xpose.msra.mxu0 0
    %457 = vmatprep.subr.bf16.mxu0 0
    %458 = vmatpush1.bf16.xpose.msra.mxu0 0
    %459 = vmatprep.subr.bf16.mxu0 0
    %460 = vmatpush1.bf16.xpose.msra.mxu0 0
    %461 = vmatprep.subr.bf16.mxu0 0
    %462 = vmatpush1.bf16.xpose.msra.mxu0 0
    %463 = vmatprep.subr.bf16.mxu0 0
    %464 = vmatpush1.bf16.xpose.msra.mxu0 0
    %465 = vmatprep.mubr.bf16.mxu0 0
    %466 = vmatmul.mubr.bf16.gmra.mrb[0].mxu0 %v432
    %v467 = vpop.f32.mrb[0].mxu0
    %v468 = vadd.f32 0.0, %v467
    %v469 = vpop.f32.mrb[0].mxu0
    %v470 = vpop.f32.mrb[0].mxu0
    %v471 = vpop.f32.mrb[0].mxu0
    %472 = vdwg.mxu0
    %473 = vset.pattern.permute.xlu0 2
    %474 = vperm.xlu0 %473, %v181
    %v475 = vpop.permute.xlu0 %474
    %v477 = vlaneseq
    %v478 = vshrl.u32 %v477, 7
    %v479 = vsub.s32 0, %v478
    %v480 = vrot.slane %v468, %v479
    %v481 = vadd.f32 %v475, %v480
    %v482 = vpack.c.bf16 %v481, %v481
    %vm483 = vcmp.gt.bf16.partialorder %v482, 0
    %v484 = vmul.bf16 %v482, 1045249613
    %v485 = vsel %vm483, %v482, %v484
    %v486 = vadd.bf16 %v485, %v186
    %v488 = vsel %vm244, %v486, 4286644096
    %490 = vmax.xlane.bf16.xlu0 %v488
    %v491 = vpop.xlane.xlu0 %490
    %v492 = vsub.bf16 %v486, %v491
    %v494 = vmul.bf16 %v492, 1069105081
    %v495 = vpow.bf16.pop %v494
    %v496 = vunpack.c.l.bf16 %v495
    %v497 = vsel %vm256, %v496, 0.0
    %498 = vadd.xlane.f32.xlu0 %v497
    %v499 = vpop.xlane.xlu0 %498
    %v500 = vrcp.pop %v499
    %v501 = vpack.c.bf16 %v500, %v500
    %v502 = vmul.bf16 %v495, %v501
    %503 = vrot.lane.b32.xlu0 %v81, 64
    %v504 = vpop.permute.xlu0 %503
    %v506 = vsel %vm256, %v502, 0
    %v509 = vsel %vm266, %v504, 0
    %511 = vmatprep.subr.bf16.mxu0 0
    %512 = vmatpush1.bf16.msra.mxu0 %v509
    %513 = vmatprep.subr.bf16.mxu0 0
    %514 = vmatpush1.bf16.msra.mxu0 0
    %515 = vmatprep.subr.bf16.mxu0 0
    %516 = vmatpush1.bf16.msra.mxu0 0
    %517 = vmatprep.subr.bf16.mxu0 0
    %518 = vmatpush1.bf16.msra.mxu0 0
    %519 = vmatprep.subr.bf16.mxu0 0
    %520 = vmatpush1.bf16.msra.mxu0 0
    %521 = vmatprep.subr.bf16.mxu0 0
    %522 = vmatpush1.bf16.msra.mxu0 0
    %523 = vmatprep.subr.bf16.mxu0 0
    %524 = vmatpush1.bf16.msra.mxu0 0
    %525 = vmatprep.subr.bf16.mxu0 0
    %526 = vmatpush1.bf16.msra.mxu0 0
    %527 = vmatprep.subr.bf16.mxu0 0
    %528 = vmatpush1.bf16.msra.mxu0 0
    %529 = vmatprep.subr.bf16.mxu0 0
    %530 = vmatpush1.bf16.msra.mxu0 0
    %531 = vmatprep.subr.bf16.mxu0 0
    %532 = vmatpush1.bf16.msra.mxu0 0
    %533 = vmatprep.subr.bf16.mxu0 0
    %534 = vmatpush1.bf16.msra.mxu0 0
    %535 = vmatprep.subr.bf16.mxu0 0
    %536 = vmatpush1.bf16.msra.mxu0 0
    %537 = vmatprep.subr.bf16.mxu0 0
    %538 = vmatpush1.bf16.msra.mxu0 0
    %539 = vmatprep.subr.bf16.mxu0 0
    %540 = vmatpush1.bf16.msra.mxu0 0
    %541 = vmatprep.subr.bf16.mxu0 0
    %542 = vmatpush1.bf16.msra.mxu0 0
    %543 = vmatprep.mubr.bf16.mxu0 0
    %544 = vmatmul.mubr.bf16.gmra.mrb[0].mxu0 %v506
    %v545 = vpop.f32.mrb[0].mxu0
    %v546 = vadd.f32 0.0, %v545
    %v547 = vpop.f32.mrb[0].mxu0
    %v548 = vpop.f32.mrb[0].mxu0
    %v549 = vpop.f32.mrb[0].mxu0
    %550 = vdwg.mxu0
    %v551 = vld [vmem:[%s2 + $0x3] sm:$0x1]
    %v552 = vpack.c.bf16 %v551, %v551
    %553 = vmatprep.subr.bf16.mxu0 0
    %554 = vmatpush1.bf16.xpose.msra.mxu0 %v81
    %555 = vmatprep.subr.bf16.mxu0 0
    %556 = vmatpush1.bf16.xpose.msra.mxu0 0
    %557 = vmatprep.subr.bf16.mxu0 0
    %558 = vmatpush1.bf16.xpose.msra.mxu0 0
    %559 = vmatprep.subr.bf16.mxu0 0
    %560 = vmatpush1.bf16.xpose.msra.mxu0 0
    %561 = vmatprep.subr.bf16.mxu0 0
    %562 = vmatpush1.bf16.xpose.msra.mxu0 0
    %563 = vmatprep.subr.bf16.mxu0 0
    %564 = vmatpush1.bf16.xpose.msra.mxu0 0
    %565 = vmatprep.subr.bf16.mxu0 0
    %566 = vmatpush1.bf16.xpose.msra.mxu0 0
    %567 = vmatprep.subr.bf16.mxu0 0
    %568 = vmatpush1.bf16.xpose.msra.mxu0 0
    %569 = vmatprep.subr.bf16.mxu0 0
    %570 = vmatpush1.bf16.xpose.msra.mxu0 0
    %571 = vmatprep.subr.bf16.mxu0 0
    %572 = vmatpush1.bf16.xpose.msra.mxu0 0
    %573 = vmatprep.subr.bf16.mxu0 0
    %574 = vmatpush1.bf16.xpose.msra.mxu0 0
    %575 = vmatprep.subr.bf16.mxu0 0
    %576 = vmatpush1.bf16.xpose.msra.mxu0 0
    %577 = vmatprep.subr.bf16.mxu0 0
    %578 = vmatpush1.bf16.xpose.msra.mxu0 0
    %579 = vmatprep.subr.bf16.mxu0 0
    %580 = vmatpush1.bf16.xpose.msra.mxu0 0
    %581 = vmatprep.subr.bf16.mxu0 0
    %582 = vmatpush1.bf16.xpose.msra.mxu0 0
    %583 = vmatprep.subr.bf16.mxu0 0
    %584 = vmatpush1.bf16.xpose.msra.mxu0 0
    %585 = vmatprep.mubr.bf16.mxu0 0
    %586 = vmatmul.mubr.bf16.gmra.mrb[0].mxu0 %v552
    %v587 = vpop.f32.mrb[0].mxu0
    %v588 = vadd.f32 0.0, %v587
    %v589 = vpop.f32.mrb[0].mxu0
    %v590 = vpop.f32.mrb[0].mxu0
    %v591 = vpop.f32.mrb[0].mxu0
    %592 = vdwg.mxu0
    %593 = vset.pattern.permute.xlu0 3
    %594 = vperm.xlu0 %593, %v181
    %v595 = vpop.permute.xlu0 %594
    %v597 = vlaneseq
    %v598 = vshrl.u32 %v597, 7
    %v599 = vsub.s32 0, %v598
    %v600 = vrot.slane %v588, %v599
    %v601 = vadd.f32 %v595, %v600
    %v602 = vpack.c.bf16 %v601, %v601
    %vm603 = vcmp.gt.bf16.partialorder %v602, 0
    %v604 = vmul.bf16 %v602, 1045249613
    %v605 = vsel %vm603, %v602, %v604
    %v606 = vadd.bf16 %v605, %v186
    %v608 = vsel %vm244, %v606, 4286644096
    %610 = vmax.xlane.bf16.xlu0 %v608
    %v611 = vpop.xlane.xlu0 %610
    %v612 = vsub.bf16 %v606, %v611
    %v614 = vmul.bf16 %v612, 1069105081
    %v615 = vpow.bf16.pop %v614
    %v616 = vunpack.c.l.bf16 %v615
    %v617 = vsel %vm256, %v616, 0.0
    %618 = vadd.xlane.f32.xlu0 %v617
    %v619 = vpop.xlane.xlu0 %618
    %v620 = vrcp.pop %v619
    %v621 = vpack.c.bf16 %v620, %v620
    %v622 = vmul.bf16 %v615, %v621
    %623 = vrot.lane.b32.xlu0 %v81, 32
    %v624 = vpop.permute.xlu0 %623
    %v626 = vsel %vm256, %v622, 0
    %v629 = vsel %vm266, %v624, 0
    %631 = vmatprep.subr.bf16.mxu0 0
    %632 = vmatpush1.bf16.msra.mxu0 %v629
    %633 = vmatprep.subr.bf16.mxu0 0
    %634 = vmatpush1.bf16.msra.mxu0 0
    %635 = vmatprep.subr.bf16.mxu0 0
    %636 = vmatpush1.bf16.msra.mxu0 0
    %637 = vmatprep.subr.bf16.mxu0 0
    %638 = vmatpush1.bf16.msra.mxu0 0
    %639 = vmatprep.subr.bf16.mxu0 0
    %640 = vmatpush1.bf16.msra.mxu0 0
    %641 = vmatprep.subr.bf16.mxu0 0
    %642 = vmatpush1.bf16.msra.mxu0 0
    %643 = vmatprep.subr.bf16.mxu0 0
    %644 = vmatpush1.bf16.msra.mxu0 0
    %645 = vmatprep.subr.bf16.mxu0 0
    %646 = vmatpush1.bf16.msra.mxu0 0
    %647 = vmatprep.subr.bf16.mxu0 0
    %648 = vmatpush1.bf16.msra.mxu0 0
    %649 = vmatprep.subr.bf16.mxu0 0
    %650 = vmatpush1.bf16.msra.mxu0 0
    %651 = vmatprep.subr.bf16.mxu0 0
    %652 = vmatpush1.bf16.msra.mxu0 0
    %653 = vmatprep.subr.bf16.mxu0 0
    %654 = vmatpush1.bf16.msra.mxu0 0
    %655 = vmatprep.subr.bf16.mxu0 0
    %656 = vmatpush1.bf16.msra.mxu0 0
    %657 = vmatprep.subr.bf16.mxu0 0
    %658 = vmatpush1.bf16.msra.mxu0 0
    %659 = vmatprep.subr.bf16.mxu0 0
    %660 = vmatpush1.bf16.msra.mxu0 0
    %661 = vmatprep.subr.bf16.mxu0 0
    %662 = vmatpush1.bf16.msra.mxu0 0
    %663 = vmatprep.mubr.bf16.mxu0 0
    %664 = vmatmul.mubr.bf16.gmra.mrb[0].mxu0 %v626
    %v665 = vpop.f32.mrb[0].mxu0
    %v666 = vadd.f32 0.0, %v665
    %v667 = vpop.f32.mrb[0].mxu0
    %v668 = vpop.f32.mrb[0].mxu0
    %v669 = vpop.f32.mrb[0].mxu0
    %670 = vdwg.mxu0
    %672 = vrot.lane.b32.xlu0 %v426, 32
    %v673 = vpop.permute.xlu0 %672
    %676 = vrot.lane.b32.xlu0 %v546, 64
    %v677 = vpop.permute.xlu0 %676
    %680 = vrot.lane.b32.xlu0 %v666, 96
    %v681 = vpop.permute.xlu0 %680
    %vm683 = vcmask 261120
    %v684 = vsel %vm683, %v305, %v673
    %vm685 = vcmask 523264
    %v686 = vsel %vm685, %v684, %v677
    %vm687 = vcmask 785408
    %v688 = vsel %vm687, %v686, %v681
    %v689 = vld [vmem:[%s5] sm:$0x1]
    %v691 = vlaneseq
    %v692 = vshrl.u32 %v691, 7
    %v693 = vsub.s32 0, %v692
    %v694 = vrot.slane %v689, %v693
    %v696 = vadd.f32 %v688, %v694
    %vm697 = vcmp.gt.f32.partialorder %v696, 0.0
    %v698 = vmul.f32 %v696, 1.442695
    %v699 = vpow.pop %v698
    %v700 = vsub.f32 %v699, 1.0
    %v701 = vsel %vm697, %v696, %v700
    %v702 = vpack.c.bf16 %v701, %v701
    %703 = vst [vmem:[#allocation2] sm:$0xf] %v702
    // Predicated region
    $region26: #{tpu_custom_call.1} parent=1 // pred_check
      _
    $region27: #{tpu_custom_call.1} parent=1 // pred_check_branch
      %705 = sbr.rel (0) target = $region29
    $region28: #{tpu_custom_call.1} parent=1 // pred_region
      %s707 = ssub.s32 64, 64
      %708 = vsyncadd [#allocation3], %s707
      %s710 = sshll.u32 [#allocation2], 4
      %s711 = int_to_ptr.vmem [resolvable:$true] %s710
      %713 = dma.vmem_to_hbm [thread:$0]  %s711, 64, %s6, [#allocation3]
    $region29: #{tpu_custom_call.1} parent=1 // pred_fallthru
      _
    // Predicated region
    $region30: #{tpu_custom_call.1} parent=1 // pred_check
      _
    $region31: #{tpu_custom_call.1} parent=1 // pred_check_branch
      %715 = sbr.rel (0) target = $region33
    $region32: #{tpu_custom_call.1} parent=1 // pred_region
      %716 = dma.done [#allocation3], 64
    $region33: #{tpu_custom_call.1} parent=1 // pred_fallthru
      _
    %717 = vsyncpa [#allocation3], 1

</llo_original>
